<compile_context>
chip_gen: v6e
topology: v6e:2x2x1
jax: 0.10.0
libtpu: 0.0.40
codegen_flags: <defaults>
</compile_context>

<pallas_src>
import jax
import jax.numpy as jnp
from jax.experimental import pallas as pl
from jax.experimental.pallas import tpu as pltpu


MAX_TILE_B = 2048   # (D=32, 2048) bf16 input tile = 128 KiB; hu/hi/fu/fi f32 ~1.5 MiB


def _round_up(x, m):
    return ((x + m - 1) // m) * m


def _fused_mlp_score_kernel(ut_ref, it_ref,
                            wu1_ref, bu1_ref, wu2_ref, bu2_ref,
                            wi1_ref, bi1_ref, wi2_ref, bi2_ref,
                            out_ref):
    # --- user tower (all matmuls have batch on lanes / N axis) ---
    hu = jnp.dot(wu1_ref[...], ut_ref[...],                       # (H, TILE_B) f32
                 preferred_element_type=jnp.float32)
    hu = jnp.maximum(hu + bu1_ref[...], 0.0)                      # bias + ReLU in f32
    fu = jnp.dot(wu2_ref[...], hu.astype(jnp.bfloat16),           # (F, TILE_B) f32
                 preferred_element_type=jnp.float32) + bu2_ref[...]

    # --- item tower ---
    hi = jnp.dot(wi1_ref[...], it_ref[...],
                 preferred_element_type=jnp.float32)
    hi = jnp.maximum(hi + bi1_ref[...], 0.0)
    fi = jnp.dot(wi2_ref[...], hi.astype(jnp.bfloat16),
                 preferred_element_type=jnp.float32) + bi2_ref[...]

    # --- score: (user_out * item_out).sum(dim=1), as an MXU reduce over the
    #     sublane (F) axis -> lane-dense (1, TILE_B) row, zero relayout. ---
    prod = fu * fi                                                # (F, TILE_B) f32
    ones = jnp.ones((1, prod.shape[0]), jnp.float32)
    out_ref[...] = jnp.dot(ones, prod, preferred_element_type=jnp.float32)


def _build_scorer(b_pad, tile_b, d, h, f):
    num_tiles = b_pad // tile_b
    flops = 2 * b_pad * (2 * (d * h + h * f) + f)
    bytes_accessed = (2 * b_pad * d * 2            # bf16 u^T / i^T slabs in
                      + 2 * (d * h + h * f) * 2    # bf16 transposed weights
                      + 2 * (h + f) * 4            # f32 biases
                      + b_pad * 4)                 # f32 scores out
    return pl.pallas_call(
        _fused_mlp_score_kernel,
        out_shape=jax.ShapeDtypeStruct((1, b_pad), jnp.float32),
        grid_spec=pltpu.PrefetchScalarGridSpec(
            num_scalar_prefetch=0,
            grid=(num_tiles,),
            in_specs=[
                pl.BlockSpec((d, tile_b), lambda i: (0, i)),   # u^T batch tile
                pl.BlockSpec((d, tile_b), lambda i: (0, i)),   # i^T batch tile
                pl.BlockSpec((h, d), lambda i: (0, 0)),        # Wu1^T (resident)
                pl.BlockSpec((h, 1), lambda i: (0, 0)),        # bu1
                pl.BlockSpec((f, h), lambda i: (0, 0)),        # Wu2^T (resident)
                pl.BlockSpec((f, 1), lambda i: (0, 0)),        # bu2
                pl.BlockSpec((h, d), lambda i: (0, 0)),        # Wi1^T (resident)
                pl.BlockSpec((h, 1), lambda i: (0, 0)),        # bi1
                pl.BlockSpec((f, h), lambda i: (0, 0)),        # Wi2^T (resident)
                pl.BlockSpec((f, 1), lambda i: (0, 0)),        # bi2
            ],
            out_specs=pl.BlockSpec((1, tile_b), lambda i: (0, i)),
        ),
        compiler_params=pltpu.CompilerParams(
            dimension_semantics=("parallel",),   # both TensorCores on v7x
        ),
        cost_estimate=pl.CostEstimate(
            flops=flops, transcendentals=0, bytes_accessed=bytes_accessed),
    )


def prep_params(user_params, item_params):
    """Transpose weights (batch-on-lanes layout) and reshape biases to columns."""
    def t_w(w):
        return jnp.asarray(w).T.astype(jnp.bfloat16)

    def t_b(b):
        return jnp.asarray(b).reshape(-1, 1).astype(jnp.float32)

    wu1, bu1, wu2, bu2 = user_params
    wi1, bi1, wi2, bi2 = item_params
    return (t_w(wu1), t_b(bu1), t_w(wu2), t_b(bu2),
            t_w(wi1), t_b(bi1), t_w(wi2), t_b(bi2))


@jax.jit
def embed_recommender_forward(query_users, query_items,
                              user_table, item_table, params):
    """query_users/query_items: (B,) int ids. Returns (B,) float32 scores."""
    (wu1t, bu1, wu2t, bu2, wi1t, bi1, wi2t, bi2) = params
    B = query_users.shape[0]
    h, d = wu1t.shape
    f = wu2t.shape[0]

    b_pad = _round_up(B, 128)
    if b_pad <= 2 * MAX_TILE_B:
        # >= 2 grid steps whenever the batch allows it (v7x megacore), tile
        # kept a multiple of 128 lanes.
        tile_b = max(128, (b_pad // 2 // 128) * 128)
    else:
        tile_b = MAX_TILE_B
    b_pad = _round_up(b_pad, tile_b)

    # useritem_embeds lookup (XLA gather) -> transposed, batch-on-lanes slabs.
    # Two separate inputs; no packed-activation concat / extra HBM round trip.
    u_t = user_table[query_users].astype(jnp.bfloat16).T     # (D, B)
    i_t = item_table[query_items].astype(jnp.bfloat16).T     # (D, B)
    pad = ((0, 0), (0, b_pad - B))
    u_t = jnp.pad(u_t, pad)
    i_t = jnp.pad(i_t, pad)

    scores = _build_scorer(b_pad, tile_b, d, h, f)(
        u_t, i_t, wu1t, bu1, wu2t, bu2, wi1t, bi1, wi2t, bi2)
    return scores[0, :B]


def make_mlp_params(key, input_size, hidden_size, final_size, dtype=jnp.bfloat16):
    """MLP(input_size, [(hidden_size, False, 0.0)], final_size=final_size)."""
    k1, k2 = jax.random.split(key)
    w1 = (jax.random.normal(k1, (input_size, hidden_size), jnp.float32)
          / jnp.sqrt(input_size)).astype(dtype)
    b1 = jnp.zeros((1, hidden_size), jnp.float32)    # linear.bias.data.fill_(0.0)
    w2 = (jax.random.normal(k2, (hidden_size, final_size), jnp.float32)
          / jnp.sqrt(hidden_size)).astype(dtype)
    b2 = jnp.zeros((1, final_size), jnp.float32)
    return (w1, b1, w2, b2)


def reference_forward(user_emb, item_emb, user_params, item_params):
    """Pure-JAX f32 reference on the same (bf16-stored) parameters."""
    wu1, bu1, wu2, bu2 = [p.astype(jnp.float32) for p in user_params]
    wi1, bi1, wi2, bi2 = [p.astype(jnp.float32) for p in item_params]
    fu = jnp.maximum(user_emb @ wu1 + bu1, 0.0) @ wu2 + bu2
    fi = jnp.maximum(item_emb @ wi1 + bi1, 0.0) @ wi2 + bi2
    return jnp.sum(fu * fi, axis=1)


if __name__ == "__main__":
    # Small shapes consistent with the module's forward:
    #   query_users / query_items: (batch,) int ids; D=32, H=64, F=32.
    B, D, H, F = 8, 32, 64, 32
    NUM_USERS, NUM_ITEMS = 100, 200

    key = jax.random.PRNGKey(0)
    k_ut, k_it, k_um, k_im, k_uid, k_iid = jax.random.split(key, 6)

    # useritem_embeds: synthetic embedding tables (stored bf16).
    user_table = jax.random.normal(k_ut, (NUM_USERS, D), jnp.float32).astype(jnp.bfloat16)
    item_table = jax.random.normal(k_it, (NUM_ITEMS, D), jnp.float32).astype(jnp.bfloat16)

    # deterministic MLP params (user_config / item_config -> module_type='mlp')
    user_params = make_mlp_params(k_um, D, H, F)
    item_params = make_mlp_params(k_im, D, H, F)
    params = prep_params(user_params, item_params)

    # query ids (batch_size,)
    query_users = jax.random.randint(k_uid, (B,), 0, NUM_USERS, dtype=jnp.int32)
    query_items = jax.random.randint(k_iid, (B,), 0, NUM_ITEMS, dtype=jnp.int32)

    scores = embed_recommender_forward(query_users, query_items,
                                       user_table, item_table, params)
    scores = jax.block_until_ready(scores)

    # Reference path (same stored params, f32 math).
    user_emb = user_table[query_users].astype(jnp.float32)
    item_emb = item_table[query_items].astype(jnp.float32)
    ref = reference_forward(user_emb, item_emb, user_params, item_params)

    assert scores.shape == (B,)
    assert jnp.allclose(scores, ref, atol=2e-2, rtol=2e-2), (scores, ref)

    print("KERNEL_OK")
</pallas_src>

<mosaic_0001>
module attributes {stable_mosaic.version = 11 : i64} {
  func.func @_fused_mlp_score_kernel(%arg0: i32, %arg1: memref<32x128xbf16, #tpu.memory_space<vmem>>, %arg2: memref<32x128xbf16, #tpu.memory_space<vmem>>, %arg3: memref<64x32xbf16, #tpu.memory_space<vmem>>, %arg4: memref<64x1xf32, #tpu.memory_space<vmem>>, %arg5: memref<32x64xbf16, #tpu.memory_space<vmem>>, %arg6: memref<32x1xf32, #tpu.memory_space<vmem>>, %arg7: memref<64x32xbf16, #tpu.memory_space<vmem>>, %arg8: memref<64x1xf32, #tpu.memory_space<vmem>>, %arg9: memref<32x64xbf16, #tpu.memory_space<vmem>>, %arg10: memref<32x1xf32, #tpu.memory_space<vmem>>, %arg11: memref<1x128xf32, #tpu.memory_space<vmem>>) attributes {dimension_semantics = [#tpu.dimension_semantics<parallel>], iteration_bounds = array<i64: 1>, scalar_prefetch = 0 : i64, scratch_operands = 0 : i64, tpu.core_type = #tpu.core_type<tc>, window_params = [{transform_indices = @transform_0, window_bounds = array<i64: 32, 128>}, {transform_indices = @transform_1, window_bounds = array<i64: 32, 128>}, {pipeline_mode = #tpu.pipeline_mode<synchronous>, transform_indices = @transform_2, window_bounds = array<i64: 64, 32>}, {pipeline_mode = #tpu.pipeline_mode<synchronous>, transform_indices = @transform_3, window_bounds = array<i64: 64, 1>}, {pipeline_mode = #tpu.pipeline_mode<synchronous>, transform_indices = @transform_4, window_bounds = array<i64: 32, 64>}, {pipeline_mode = #tpu.pipeline_mode<synchronous>, transform_indices = @transform_5, window_bounds = array<i64: 32, 1>}, {pipeline_mode = #tpu.pipeline_mode<synchronous>, transform_indices = @transform_6, window_bounds = array<i64: 64, 32>}, {pipeline_mode = #tpu.pipeline_mode<synchronous>, transform_indices = @transform_7, window_bounds = array<i64: 64, 1>}, {pipeline_mode = #tpu.pipeline_mode<synchronous>, transform_indices = @transform_8, window_bounds = array<i64: 32, 64>}, {pipeline_mode = #tpu.pipeline_mode<synchronous>, transform_indices = @transform_9, window_bounds = array<i64: 32, 1>}, {transform_indices = @transform_10, window_bounds = array<i64: 1, 128>}]} {
    %c0 = arith.constant 0 : index
    %c0_0 = arith.constant 0 : index
    %0 = vector.load %arg3[%c0, %c0_0] : memref<64x32xbf16, #tpu.memory_space<vmem>>, vector<64x32xbf16>
    %c0_1 = arith.constant 0 : index
    %c0_2 = arith.constant 0 : index
    %1 = vector.load %arg1[%c0_1, %c0_2] : memref<32x128xbf16, #tpu.memory_space<vmem>>, vector<32x128xbf16>
    %cst = arith.constant dense<0.000000e+00> : vector<64x128xf32>
    %2 = tpu.matmul %0, %1, %cst {dimension_numbers = #tpu.dot_dimension_numbers<[1], [0], [0], [1], [0, 0, 1, 1], [], []>} : vector<64x32xbf16>, vector<32x128xbf16>, vector<64x128xf32> -> vector<64x128xf32>
    %c0_3 = arith.constant 0 : index
    %c0_4 = arith.constant 0 : index
    %3 = vector.load %arg4[%c0_3, %c0_4] : memref<64x1xf32, #tpu.memory_space<vmem>>, vector<64x1xf32>
    %4 = vector.broadcast %3 : vector<64x1xf32> to vector<64x128xf32>
    %5 = arith.addf %2, %4 : vector<64x128xf32>
    %cst_5 = arith.constant 0.000000e+00 : f32
    %6 = vector.broadcast %cst_5 : f32 to vector<64x128xf32>
    %7 = arith.maximumf %5, %6 : vector<64x128xf32>
    %c0_6 = arith.constant 0 : index
    %c0_7 = arith.constant 0 : index
    %8 = vector.load %arg5[%c0_6, %c0_7] : memref<32x64xbf16, #tpu.memory_space<vmem>>, vector<32x64xbf16>
    %9 = arith.truncf %7 : vector<64x128xf32> to vector<64x128xbf16>
    %cst_8 = arith.constant dense<0.000000e+00> : vector<32x128xf32>
    %10 = tpu.matmul %8, %9, %cst_8 {dimension_numbers = #tpu.dot_dimension_numbers<[1], [0], [0], [1], [0, 0, 1, 1], [], []>} : vector<32x64xbf16>, vector<64x128xbf16>, vector<32x128xf32> -> vector<32x128xf32>
    %c0_9 = arith.constant 0 : index
    %c0_10 = arith.constant 0 : index
    %11 = vector.load %arg6[%c0_9, %c0_10] : memref<32x1xf32, #tpu.memory_space<vmem>>, vector<32x1xf32>
    %12 = vector.broadcast %11 : vector<32x1xf32> to vector<32x128xf32>
    %13 = arith.addf %10, %12 : vector<32x128xf32>
    %c0_11 = arith.constant 0 : index
    %c0_12 = arith.constant 0 : index
    %14 = vector.load %arg7[%c0_11, %c0_12] : memref<64x32xbf16, #tpu.memory_space<vmem>>, vector<64x32xbf16>
    %c0_13 = arith.constant 0 : index
    %c0_14 = arith.constant 0 : index
    %15 = vector.load %arg2[%c0_13, %c0_14] : memref<32x128xbf16, #tpu.memory_space<vmem>>, vector<32x128xbf16>
    %cst_15 = arith.constant dense<0.000000e+00> : vector<64x128xf32>
    %16 = tpu.matmul %14, %15, %cst_15 {dimension_numbers = #tpu.dot_dimension_numbers<[1], [0], [0], [1], [0, 0, 1, 1], [], []>} : vector<64x32xbf16>, vector<32x128xbf16>, vector<64x128xf32> -> vector<64x128xf32>
    %c0_16 = arith.constant 0 : index
    %c0_17 = arith.constant 0 : index
    %17 = vector.load %arg8[%c0_16, %c0_17] : memref<64x1xf32, #tpu.memory_space<vmem>>, vector<64x1xf32>
    %18 = vector.broadcast %17 : vector<64x1xf32> to vector<64x128xf32>
    %19 = arith.addf %16, %18 : vector<64x128xf32>
    %cst_18 = arith.constant 0.000000e+00 : f32
    %20 = vector.broadcast %cst_18 : f32 to vector<64x128xf32>
    %21 = arith.maximumf %19, %20 : vector<64x128xf32>
    %c0_19 = arith.constant 0 : index
    %c0_20 = arith.constant 0 : index
    %22 = vector.load %arg9[%c0_19, %c0_20] : memref<32x64xbf16, #tpu.memory_space<vmem>>, vector<32x64xbf16>
    %23 = arith.truncf %21 : vector<64x128xf32> to vector<64x128xbf16>
    %cst_21 = arith.constant dense<0.000000e+00> : vector<32x128xf32>
    %24 = tpu.matmul %22, %23, %cst_21 {dimension_numbers = #tpu.dot_dimension_numbers<[1], [0], [0], [1], [0, 0, 1, 1], [], []>} : vector<32x64xbf16>, vector<64x128xbf16>, vector<32x128xf32> -> vector<32x128xf32>
    %c0_22 = arith.constant 0 : index
    %c0_23 = arith.constant 0 : index
    %25 = vector.load %arg10[%c0_22, %c0_23] : memref<32x1xf32, #tpu.memory_space<vmem>>, vector<32x1xf32>
    %26 = vector.broadcast %25 : vector<32x1xf32> to vector<32x128xf32>
    %27 = arith.addf %24, %26 : vector<32x128xf32>
    %28 = arith.mulf %13, %27 : vector<32x128xf32>
    %cst_24 = arith.constant 1.000000e+00 : f32
    %29 = vector.broadcast %cst_24 : f32 to vector<1x32xf32>
    %cst_25 = arith.constant dense<0.000000e+00> : vector<1x128xf32>
    %30 = tpu.matmul %29, %28, %cst_25 {dimension_numbers = #tpu.dot_dimension_numbers<[1], [0], [0], [1], [0, 0, 1, 1], [], []>} : vector<1x32xf32>, vector<32x128xf32>, vector<1x128xf32> -> vector<1x128xf32>
    %c0_26 = arith.constant 0 : index
    %c0_27 = arith.constant 0 : index
    %31 = vector.load %arg11[%c0_26, %c0_27] : memref<1x128xf32, #tpu.memory_space<vmem>>, vector<1x128xf32>
    tpu.vector_store %arg11[%c0_26, %c0_27], %30 {strides = array<i32>} : memref<1x128xf32, #tpu.memory_space<vmem>>, vector<1x128xf32>,
    return
  }
  func.func @transform_0(%arg0: i32) -> (i32, i32) {
    %c0_i32 = arith.constant 0 : i32
    %c0_i32_0 = arith.constant 0 : i32
    return %c0_i32, %arg0 : i32, i32
  }
  func.func @transform_1(%arg0: i32) -> (i32, i32) {
    %c0_i32 = arith.constant 0 : i32
    %c0_i32_0 = arith.constant 0 : i32
    return %c0_i32, %arg0 : i32, i32
  }
  func.func @transform_2(%arg0: i32) -> (i32, i32) {
    %c0_i32 = arith.constant 0 : i32
    %c0_i32_0 = arith.constant 0 : i32
    %c0_i32_1 = arith.constant 0 : i32
    return %c0_i32, %c0_i32_0 : i32, i32
  }
  func.func @transform_3(%arg0: i32) -> (i32, i32) {
    %c0_i32 = arith.constant 0 : i32
    %c0_i32_0 = arith.constant 0 : i32
    %c0_i32_1 = arith.constant 0 : i32
    return %c0_i32, %c0_i32_0 : i32, i32
  }
  func.func @transform_4(%arg0: i32) -> (i32, i32) {
    %c0_i32 = arith.constant 0 : i32
    %c0_i32_0 = arith.constant 0 : i32
    %c0_i32_1 = arith.constant 0 : i32
    return %c0_i32, %c0_i32_0 : i32, i32
  }
  func.func @transform_5(%arg0: i32) -> (i32, i32) {
    %c0_i32 = arith.constant 0 : i32
    %c0_i32_0 = arith.constant 0 : i32
    %c0_i32_1 = arith.constant 0 : i32
    return %c0_i32, %c0_i32_0 : i32, i32
  }
  func.func @transform_6(%arg0: i32) -> (i32, i32) {
    %c0_i32 = arith.constant 0 : i32
    %c0_i32_0 = arith.constant 0 : i32
    %c0_i32_1 = arith.constant 0 : i32
    return %c0_i32, %c0_i32_0 : i32, i32
  }
  func.func @transform_7(%arg0: i32) -> (i32, i32) {
    %c0_i32 = arith.constant 0 : i32
    %c0_i32_0 = arith.constant 0 : i32
    %c0_i32_1 = arith.constant 0 : i32
    return %c0_i32, %c0_i32_0 : i32, i32
  }
  func.func @transform_8(%arg0: i32) -> (i32, i32) {
    %c0_i32 = arith.constant 0 : i32
    %c0_i32_0 = arith.constant 0 : i32
    %c0_i32_1 = arith.constant 0 : i32
    return %c0_i32, %c0_i32_0 : i32, i32
  }
  func.func @transform_9(%arg0: i32) -> (i32, i32) {
    %c0_i32 = arith.constant 0 : i32
    %c0_i32_0 = arith.constant 0 : i32
    %c0_i32_1 = arith.constant 0 : i32
    return %c0_i32, %c0_i32_0 : i32, i32
  }
  func.func @transform_10(%arg0: i32) -> (i32, i32) {
    %c0_i32 = arith.constant 0 : i32
    %c0_i32_0 = arith.constant 0 : i32
    return %c0_i32, %arg0 : i32, i32
  }
}

</mosaic_0001>

<llo_original>
// kernel: embed_recommender_forward.1
$region0: #{embed_recommender_forward.1}
  #allocation0 [shape = 'u32[]', space=smem, size = 0x4, offset = 0x4, fixed_abs, tag = 'smem constant byte address 0x4 - core index']
  #allocation1 [shape = 'u32[144,128]{1,0:T(1,128)}', space=vmem, size = 0x12000, scoped, tag = 'internal scratch']
  %s0 = inlined_call_operand.vmem [shape: bf16[32,128], index: 0, kind: input, shape index: {}]
  %s1 = inlined_call_operand.vmem [shape: bf16[32,128], index: 1, kind: input, shape index: {}]
  %s2 = inlined_call_operand.vmem [shape: bf16[64,32], index: 2, kind: input, shape index: {}]
  %s3 = inlined_call_operand.vmem [shape: f32[64,1], index: 3, kind: input, shape index: {}]
  %s4 = inlined_call_operand.vmem [shape: bf16[32,64], index: 4, kind: input, shape index: {}]
  %s5 = inlined_call_operand.vmem [shape: f32[32,1], index: 5, kind: input, shape index: {}]
  %s6 = inlined_call_operand.vmem [shape: bf16[64,32], index: 6, kind: input, shape index: {}]
  %s7 = inlined_call_operand.vmem [shape: f32[64,1], index: 7, kind: input, shape index: {}]
  %s8 = inlined_call_operand.vmem [shape: bf16[32,64], index: 8, kind: input, shape index: {}]
  %s9 = inlined_call_operand.vmem [shape: f32[32,1], index: 9, kind: input, shape index: {}]
  %s10 = inlined_call_operand.vmem [shape: f32[1,128], index: 10, kind: output, shape index: {}]
  %s11 = sld [smem:[#allocation0]]
  $region50: #{embed_recommender_forward.1} parent=0
    _
  %s13 = ssub.s32 1, %s11
  %s14 = scalar_select 0, %s13, %s11
  // Predicated region
  $region2: #{embed_recommender_forward.1} parent=0 // pred_check
    _
  $region3: #{embed_recommender_forward.1} parent=0 // pred_check_branch
    %16 = sbr.rel (0) target = $region5
  $region4: #{embed_recommender_forward.1} parent=0 // pred_region
    _
  $region5: #{embed_recommender_forward.1} parent=0 // pred_fallthru
    _
  // Predicated region
  $region6: #{embed_recommender_forward.1} parent=0 // pred_check
    _
  $region7: #{embed_recommender_forward.1} parent=0 // pred_check_branch
    %18 = sbr.rel (0) target = $region9
  $region8: #{embed_recommender_forward.1} parent=0 // pred_region
    _
  $region9: #{embed_recommender_forward.1} parent=0 // pred_fallthru
    _
  // Predicated region
  $region10: #{embed_recommender_forward.1} parent=0 // pred_check
    _
  $region11: #{embed_recommender_forward.1} parent=0 // pred_check_branch
    %20 = sbr.rel (0) target = $region13
  $region12: #{embed_recommender_forward.1} parent=0 // pred_region
    _
  $region13: #{embed_recommender_forward.1} parent=0 // pred_fallthru
    _
  // Predicated region
  $region14: #{embed_recommender_forward.1} parent=0 // pred_check
    _
  $region15: #{embed_recommender_forward.1} parent=0 // pred_check_branch
    %22 = sbr.rel (0) target = $region17
  $region16: #{embed_recommender_forward.1} parent=0 // pred_region
    _
  $region17: #{embed_recommender_forward.1} parent=0 // pred_fallthru
    _
  // Predicated region
  $region18: #{embed_recommender_forward.1} parent=0 // pred_check
    _
  $region19: #{embed_recommender_forward.1} parent=0 // pred_check_branch
    %24 = sbr.rel (0) target = $region21
  $region20: #{embed_recommender_forward.1} parent=0 // pred_region
    _
  $region21: #{embed_recommender_forward.1} parent=0 // pred_fallthru
    _
  // Predicated region
  $region22: #{embed_recommender_forward.1} parent=0 // pred_check
    _
  $region23: #{embed_recommender_forward.1} parent=0 // pred_check_branch
    %26 = sbr.rel (0) target = $region25
  $region24: #{embed_recommender_forward.1} parent=0 // pred_region
    _
  $region25: #{embed_recommender_forward.1} parent=0 // pred_fallthru
    _
  // Predicated region
  $region26: #{embed_recommender_forward.1} parent=0 // pred_check
    _
  $region27: #{embed_recommender_forward.1} parent=0 // pred_check_branch
    %28 = sbr.rel (0) target = $region29
  $region28: #{embed_recommender_forward.1} parent=0 // pred_region
    _
  $region29: #{embed_recommender_forward.1} parent=0 // pred_fallthru
    _
  // Predicated region
  $region30: #{embed_recommender_forward.1} parent=0 // pred_check
    _
  $region31: #{embed_recommender_forward.1} parent=0 // pred_check_branch
    %30 = sbr.rel (0) target = $region33
  $region32: #{embed_recommender_forward.1} parent=0 // pred_region
    _
  $region33: #{embed_recommender_forward.1} parent=0 // pred_fallthru
    _
  // Predicated region
  $region34: #{embed_recommender_forward.1} parent=0 // pred_check
    _
  $region35: #{embed_recommender_forward.1} parent=0 // pred_check_branch
    %32 = sbr.rel (0) target = $region37
  $region36: #{embed_recommender_forward.1} parent=0 // pred_region
    _
  $region37: #{embed_recommender_forward.1} parent=0 // pred_fallthru
    _
  // Predicated region
  $region38: #{embed_recommender_forward.1} parent=0 // pred_check
    _
  $region39: #{embed_recommender_forward.1} parent=0 // pred_check_branch
    %34 = sbr.rel (0) target = $region41
  $region40: #{embed_recommender_forward.1} parent=0 // pred_region
    _
  $region41: #{embed_recommender_forward.1} parent=0 // pred_fallthru
    _
  %v36 = vld [vmem:[%s2] sm:$0xf]
  %v37 = vld [vmem:[%s2 + $0x4] sm:$0xf]
  %v38 = vld [vmem:[%s2 + $0x8] sm:$0xf]
  %v39 = vld [vmem:[%s2 + $0xc] sm:$0xf]
  %v40 = vld [vmem:[%s2 + $0x10] sm:$0xf]
  %v41 = vld [vmem:[%s2 + $0x14] sm:$0xf]
  %v42 = vld [vmem:[%s2 + $0x18] sm:$0xf]
  %v43 = vld [vmem:[%s2 + $0x1c] sm:$0xf]
  %v44 = vld [vmem:[%s0] sm:$0xf]
  %v45 = vld [vmem:[%s0 + $0x4] sm:$0xf]
  %v46 = vld [vmem:[%s0 + $0x8] sm:$0xf]
  %v47 = vld [vmem:[%s0 + $0xc] sm:$0xf]
  %v48 = vld [vmem:[%s3] sm:$0xff]
  %v49 = vld [vmem:[%s3 + $0x8] sm:$0xff]
  %v50 = vld [vmem:[%s3 + $0x10] sm:$0xff]
  %v51 = vld [vmem:[%s3 + $0x18] sm:$0xff]
  %v52 = vld [vmem:[%s3 + $0x20] sm:$0xff]
  %v53 = vld [vmem:[%s3 + $0x28] sm:$0xff]
  %v54 = vld [vmem:[%s3 + $0x30] sm:$0xff]
  %v55 = vld [vmem:[%s3 + $0x38] sm:$0xff]
  %57 = vset.pattern.permute.xlu0 0
  %58 = vperm.xlu0 %57, %v48
  %v59 = vpop.permute.xlu0 %58
  %62 = vset.pattern.permute.xlu0 0
  %63 = vperm.xlu0 %62, %v49
  %v64 = vpop.permute.xlu0 %63
  %67 = vset.pattern.permute.xlu0 0
  %68 = vperm.xlu0 %67, %v50
  %v69 = vpop.permute.xlu0 %68
  %72 = vset.pattern.permute.xlu0 0
  %73 = vperm.xlu0 %72, %v51
  %v74 = vpop.permute.xlu0 %73
  %77 = vset.pattern.permute.xlu0 0
  %78 = vperm.xlu0 %77, %v52
  %v79 = vpop.permute.xlu0 %78
  %82 = vset.pattern.permute.xlu0 0
  %83 = vperm.xlu0 %82, %v53
  %v84 = vpop.permute.xlu0 %83
  %87 = vset.pattern.permute.xlu0 0
  %88 = vperm.xlu0 %87, %v54
  %v89 = vpop.permute.xlu0 %88
  %92 = vset.pattern.permute.xlu0 0
  %93 = vperm.xlu0 %92, %v55
  %v94 = vpop.permute.xlu0 %93
  %v104 = vunpack.c.l.b16 %v36
  %v105 = vunpack.c.l.b16 %v37
  %v106 = vunpack.c.l.b16 %v38
  %v107 = vunpack.c.l.b16 %v39
  %v108 = vunpack.c.l.b16 %v40
  %v109 = vunpack.c.l.b16 %v41
  %v110 = vunpack.c.l.b16 %v42
  %v111 = vunpack.c.l.b16 %v43
  %v112 = vpack.c.b16 %v105, %v104
  %v113 = vpack.c.b16 %v107, %v106
  %v114 = vpack.c.b16 %v109, %v108
  %v115 = vpack.c.b16 %v111, %v110
  %v120 = vunpack.c.l.b16 %v44
  %v121 = vunpack.c.l.b16 %v45
  %v122 = vunpack.c.l.b16 %v46
  %v123 = vunpack.c.l.b16 %v47
  %v124 = vpack.c.b16 %v121, %v120
  %v125 = vpack.c.b16 %v123, %v122
  %vm128 = vcmask 261120
  %v130 = vsel %vm128, %v112, 0
  %v133 = vsel %vm128, %v113, 0
  %v136 = vsel %vm128, %v114, 0
  %v139 = vsel %vm128, %v115, 0
  %141 = vmatprep.subr.bf16.mxu0 0
  %142 = vmatpush1.bf16.msra.mxu0 0
  %143 = vmatprep.subr.bf16.mxu0 0
  %144 = vmatpush1.bf16.msra.mxu0 0
  %145 = vmatprep.subr.bf16.mxu0 0
  %146 = vmatpush1.bf16.msra.mxu0 0
  %147 = vmatprep.subr.bf16.mxu0 0
  %148 = vmatpush1.bf16.msra.mxu0 0
  %149 = vmatprep.subr.bf16.mxu0 0
  %150 = vmatpush1.bf16.msra.mxu0 0
  %151 = vmatprep.subr.bf16.mxu0 0
  %152 = vmatpush1.bf16.msra.mxu0 0
  %153 = vmatprep.subr.bf16.mxu0 0
  %154 = vmatpush1.bf16.msra.mxu0 %v125
  %155 = vmatprep.subr.bf16.mxu0 0
  %156 = vmatpush1.bf16.msra.mxu0 %v124
  %157 = vmatprep.subr.bf16.mxu0 0
  %158 = vmatpush2.bf16.msra.mxu0 0
  %159 = vmatprep.subr.bf16.mxu0 0
  %160 = vmatpush2.bf16.msra.mxu0 0
  %161 = vmatprep.subr.bf16.mxu0 0
  %162 = vmatpush2.bf16.msra.mxu0 0
  %163 = vmatprep.subr.bf16.mxu0 0
  %164 = vmatpush2.bf16.msra.mxu0 0
  %165 = vmatprep.subr.bf16.mxu0 0
  %166 = vmatpush2.bf16.msra.mxu0 0
  %167 = vmatprep.subr.bf16.mxu0 0
  %168 = vmatpush2.bf16.msra.mxu0 0
  %169 = vmatprep.subr.bf16.mxu0 0
  %170 = vmatpush2.bf16.msra.mxu0 0
  %171 = vmatprep.subr.bf16.mxu0 0
  %172 = vmatpush2.bf16.msra.mxu0 0
  %173 = vmatprep.mubr.bf16.mxu0 0
  %174 = vmatmul.mubr.bf16.gmra.mxu0 %v130
  %v175 = vpop.f32.mrf.mxu0
  %v176 = vadd.f32 %v59, %v175
  %v177 = vpop.f32.mrf.mxu0
  %v178 = vpop.f32.mrf.mxu0
  %v179 = vadd.f32 %v64, %v178
  %v180 = vpop.f32.mrf.mxu0
  %181 = vmatprep.mubr.bf16.mxu0 0
  %182 = vmatmul.mubr.bf16.gmra.mxu0 %v133
  %v183 = vpop.f32.mrf.mxu0
  %v184 = vadd.f32 %v69, %v183
  %v185 = vpop.f32.mrf.mxu0
  %v186 = vpop.f32.mrf.mxu0
  %v187 = vadd.f32 %v74, %v186
  %v188 = vpop.f32.mrf.mxu0
  %189 = vmatprep.mubr.bf16.mxu0 0
  %190 = vmatmul.mubr.bf16.gmra.mxu0 %v136
  %v191 = vpop.f32.mrf.mxu0
  %v192 = vadd.f32 %v79, %v191
  %v193 = vpop.f32.mrf.mxu0
  %v194 = vpop.f32.mrf.mxu0
  %v195 = vadd.f32 %v84, %v194
  %v196 = vpop.f32.mrf.mxu0
  %197 = vmatprep.mubr.bf16.mxu0 0
  %198 = vmatmul.mubr.bf16.gmra.mxu0 %v139
  %v199 = vpop.f32.mrf.mxu0
  %v200 = vadd.f32 %v89, %v199
  %v201 = vpop.f32.mrf.mxu0
  %v202 = vpop.f32.mrf.mxu0
  %v203 = vadd.f32 %v94, %v202
  %v204 = vpop.f32.mrf.mxu0
  %205 = vdwg.mxu0
  %v206 = vmax.f32 %v176, 0.0
  %v207 = vmax.f32 %v179, 0.0
  %v208 = vmax.f32 %v184, 0.0
  %v209 = vmax.f32 %v187, 0.0
  %v210 = vmax.f32 %v192, 0.0
  %v211 = vmax.f32 %v195, 0.0
  %v212 = vmax.f32 %v200, 0.0
  %v213 = vmax.f32 %v203, 0.0
  %v214 = vld [vmem:[%s4] sm:$0xf]
  %v215 = vld [vmem:[%s4 + $0x4] sm:$0xf]
  %v216 = vld [vmem:[%s4 + $0x8] sm:$0xf]
  %v217 = vld [vmem:[%s4 + $0xc] sm:$0xf]
  %v218 = vpack.c.bf16 %v207, %v206
  %v219 = vpack.c.bf16 %v209, %v208
  %v220 = vpack.c.bf16 %v211, %v210
  %v221 = vpack.c.bf16 %v213, %v212
  %v222 = vld [vmem:[%s5] sm:$0xff]
  %v223 = vld [vmem:[%s5 + $0x8] sm:$0xff]
  %v224 = vld [vmem:[%s5 + $0x10] sm:$0xff]
  %v225 = vld [vmem:[%s5 + $0x18] sm:$0xff]
  %227 = vset.pattern.permute.xlu0 0
  %228 = vperm.xlu0 %227, %v222
  %v229 = vpop.permute.xlu0 %228
  %232 = vset.pattern.permute.xlu0 0
  %233 = vperm.xlu0 %232, %v223
  %v234 = vpop.permute.xlu0 %233
  %237 = vset.pattern.permute.xlu0 0
  %238 = vperm.xlu0 %237, %v224
  %v239 = vpop.permute.xlu0 %238
  %242 = vset.pattern.permute.xlu0 0
  %243 = vperm.xlu0 %242, %v225
  %v244 = vpop.permute.xlu0 %243
  %v250 = vunpack.c.l.b16 %v214
  %v251 = vunpack.c.l.b16 %v215
  %v252 = vunpack.c.l.b16 %v216
  %v253 = vunpack.c.l.b16 %v217
  %v254 = vpack.c.b16 %v251, %v250
  %v255 = vpack.c.b16 %v253, %v252
  %vm256 = vcmask 523264
  %v258 = vsel %vm256, %v254, 0
  %v261 = vsel %vm256, %v255, 0
  %263 = vmatprep.subr.bf16.mxu0 0
  %264 = vmatpush1.bf16.msra.mxu0 0
  %265 = vmatprep.subr.bf16.mxu0 0
  %266 = vmatpush1.bf16.msra.mxu0 0
  %267 = vmatprep.subr.bf16.mxu0 0
  %268 = vmatpush1.bf16.msra.mxu0 0
  %269 = vmatprep.subr.bf16.mxu0 0
  %270 = vmatpush1.bf16.msra.mxu0 0
  %271 = vmatprep.subr.bf16.mxu0 0
  %272 = vmatpush1.bf16.msra.mxu0 %v221
  %273 = vmatprep.subr.bf16.mxu0 0
  %274 = vmatpush1.bf16.msra.mxu0 %v220
  %275 = vmatprep.subr.bf16.mxu0 0
  %276 = vmatpush1.bf16.msra.mxu0 %v219
  %277 = vmatprep.subr.bf16.mxu0 0
  %278 = vmatpush1.bf16.msra.mxu0 %v218
  %279 = vmatprep.subr.bf16.mxu0 0
  %280 = vmatpush2.bf16.msra.mxu0 0
  %281 = vmatprep.subr.bf16.mxu0 0
  %282 = vmatpush2.bf16.msra.mxu0 0
  %283 = vmatprep.subr.bf16.mxu0 0
  %284 = vmatpush2.bf16.msra.mxu0 0
  %285 = vmatprep.subr.bf16.mxu0 0
  %286 = vmatpush2.bf16.msra.mxu0 0
  %287 = vmatprep.subr.bf16.mxu0 0
  %288 = vmatpush2.bf16.msra.mxu0 0
  %289 = vmatprep.subr.bf16.mxu0 0
  %290 = vmatpush2.bf16.msra.mxu0 0
  %291 = vmatprep.subr.bf16.mxu0 0
  %292 = vmatpush2.bf16.msra.mxu0 0
  %293 = vmatprep.subr.bf16.mxu0 0
  %294 = vmatpush2.bf16.msra.mxu0 0
  %295 = vmatprep.mubr.bf16.mxu0 0
  %296 = vmatmul.mubr.bf16.gmra.mxu0 %v258
  %v297 = vpop.f32.mrf.mxu0
  %v298 = vadd.f32 %v229, %v297
  %v299 = vpop.f32.mrf.mxu0
  %v300 = vpop.f32.mrf.mxu0
  %v301 = vadd.f32 %v234, %v300
  %v302 = vpop.f32.mrf.mxu0
  %303 = vmatprep.mubr.bf16.mxu0 0
  %304 = vmatmul.mubr.bf16.gmra.mxu0 %v261
  %v305 = vpop.f32.mrf.mxu0
  %v306 = vadd.f32 %v239, %v305
  %v307 = vpop.f32.mrf.mxu0
  %v308 = vpop.f32.mrf.mxu0
  %v309 = vadd.f32 %v244, %v308
  %v310 = vpop.f32.mrf.mxu0
  %311 = vdwg.mxu0
  %v312 = vld [vmem:[%s6] sm:$0xf]
  %v313 = vld [vmem:[%s6 + $0x4] sm:$0xf]
  %v314 = vld [vmem:[%s6 + $0x8] sm:$0xf]
  %v315 = vld [vmem:[%s6 + $0xc] sm:$0xf]
  %v316 = vld [vmem:[%s6 + $0x10] sm:$0xf]
  %v317 = vld [vmem:[%s6 + $0x14] sm:$0xf]
  %v318 = vld [vmem:[%s6 + $0x18] sm:$0xf]
  %v319 = vld [vmem:[%s6 + $0x1c] sm:$0xf]
  %v320 = vld [vmem:[%s1] sm:$0xf]
  %v321 = vld [vmem:[%s1 + $0x4] sm:$0xf]
  %v322 = vld [vmem:[%s1 + $0x8] sm:$0xf]
  %v323 = vld [vmem:[%s1 + $0xc] sm:$0xf]
  %v324 = vld [vmem:[%s7] sm:$0xff]
  %v325 = vld [vmem:[%s7 + $0x8] sm:$0xff]
  %v326 = vld [vmem:[%s7 + $0x10] sm:$0xff]
  %v327 = vld [vmem:[%s7 + $0x18] sm:$0xff]
  %v328 = vld [vmem:[%s7 + $0x20] sm:$0xff]
  %v329 = vld [vmem:[%s7 + $0x28] sm:$0xff]
  %v330 = vld [vmem:[%s7 + $0x30] sm:$0xff]
  %v331 = vld [vmem:[%s7 + $0x38] sm:$0xff]
  %333 = vset.pattern.permute.xlu0 0
  %334 = vperm.xlu0 %333, %v324
  %v335 = vpop.permute.xlu0 %334
  %338 = vset.pattern.permute.xlu0 0
  %339 = vperm.xlu0 %338, %v325
  %v340 = vpop.permute.xlu0 %339
  %343 = vset.pattern.permute.xlu0 0
  %344 = vperm.xlu0 %343, %v326
  %v345 = vpop.permute.xlu0 %344
  %348 = vset.pattern.permute.xlu0 0
  %349 = vperm.xlu0 %348, %v327
  %v350 = vpop.permute.xlu0 %349
  %353 = vset.pattern.permute.xlu0 0
  %354 = vperm.xlu0 %353, %v328
  %v355 = vpop.permute.xlu0 %354
  %358 = vset.pattern.permute.xlu0 0
  %359 = vperm.xlu0 %358, %v329
  %v360 = vpop.permute.xlu0 %359
  %363 = vset.pattern.permute.xlu0 0
  %364 = vperm.xlu0 %363, %v330
  %v365 = vpop.permute.xlu0 %364
  %368 = vset.pattern.permute.xlu0 0
  %369 = vperm.xlu0 %368, %v331
  %v370 = vpop.permute.xlu0 %369
  %v380 = vunpack.c.l.b16 %v312
  %v381 = vunpack.c.l.b16 %v313
  %v382 = vunpack.c.l.b16 %v314
  %v383 = vunpack.c.l.b16 %v315
  %v384 = vunpack.c.l.b16 %v316
  %v385 = vunpack.c.l.b16 %v317
  %v386 = vunpack.c.l.b16 %v318
  %v387 = vunpack.c.l.b16 %v319
  %v388 = vpack.c.b16 %v381, %v380
  %v389 = vpack.c.b16 %v383, %v382
  %v390 = vpack.c.b16 %v385, %v384
  %v391 = vpack.c.b16 %v387, %v386
  %v396 = vunpack.c.l.b16 %v320
  %v397 = vunpack.c.l.b16 %v321
  %v398 = vunpack.c.l.b16 %v322
  %v399 = vunpack.c.l.b16 %v323
  %v400 = vpack.c.b16 %v397, %v396
  %v401 = vpack.c.b16 %v399, %v398
  %v405 = vsel %vm128, %v388, 0
  %v408 = vsel %vm128, %v389, 0
  %v411 = vsel %vm128, %v390, 0
  %v414 = vsel %vm128, %v391, 0
  %416 = vmatprep.subr.bf16.mxu0 0
  %417 = vmatpush1.bf16.msra.mxu0 0
  %418 = vmatprep.subr.bf16.mxu0 0
  %419 = vmatpush1.bf16.msra.mxu0 0
  %420 = vmatprep.subr.bf16.mxu0 0
  %421 = vmatpush1.bf16.msra.mxu0 0
  %422 = vmatprep.subr.bf16.mxu0 0
  %423 = vmatpush1.bf16.msra.mxu0 0
  %424 = vmatprep.subr.bf16.mxu0 0
  %425 = vmatpush1.bf16.msra.mxu0 0
  %426 = vmatprep.subr.bf16.mxu0 0
  %427 = vmatpush1.bf16.msra.mxu0 0
  %428 = vmatprep.subr.bf16.mxu0 0
  %429 = vmatpush1.bf16.msra.mxu0 %v401
  %430 = vmatprep.subr.bf16.mxu0 0
  %431 = vmatpush1.bf16.msra.mxu0 %v400
  %432 = vmatprep.subr.bf16.mxu0 0
  %433 = vmatpush2.bf16.msra.mxu0 0
  %434 = vmatprep.subr.bf16.mxu0 0
  %435 = vmatpush2.bf16.msra.mxu0 0
  %436 = vmatprep.subr.bf16.mxu0 0
  %437 = vmatpush2.bf16.msra.mxu0 0
  %438 = vmatprep.subr.bf16.mxu0 0
  %439 = vmatpush2.bf16.msra.mxu0 0
  %440 = vmatprep.subr.bf16.mxu0 0
  %441 = vmatpush2.bf16.msra.mxu0 0
  %442 = vmatprep.subr.bf16.mxu0 0
  %443 = vmatpush2.bf16.msra.mxu0 0
  %444 = vmatprep.subr.bf16.mxu0 0
  %445 = vmatpush2.bf16.msra.mxu0 0
  %446 = vmatprep.subr.bf16.mxu0 0
  %447 = vmatpush2.bf16.msra.mxu0 0
  %448 = vmatprep.mubr.bf16.mxu0 0
  %449 = vmatmul.mubr.bf16.gmra.mxu0 %v405
  %v450 = vpop.f32.mrf.mxu0
  %v451 = vadd.f32 %v335, %v450
  %v452 = vpop.f32.mrf.mxu0
  %v453 = vpop.f32.mrf.mxu0
  %v454 = vadd.f32 %v340, %v453
  %v455 = vpop.f32.mrf.mxu0
  %456 = vmatprep.mubr.bf16.mxu0 0
  %457 = vmatmul.mubr.bf16.gmra.mxu0 %v408
  %v458 = vpop.f32.mrf.mxu0
  %v459 = vadd.f32 %v345, %v458
  %v460 = vpop.f32.mrf.mxu0
  %v461 = vpop.f32.mrf.mxu0
  %v462 = vadd.f32 %v350, %v461
  %v463 = vpop.f32.mrf.mxu0
  %464 = vmatprep.mubr.bf16.mxu0 0
  %465 = vmatmul.mubr.bf16.gmra.mxu0 %v411
  %v466 = vpop.f32.mrf.mxu0
  %v467 = vadd.f32 %v355, %v466
  %v468 = vpop.f32.mrf.mxu0
  %v469 = vpop.f32.mrf.mxu0
  %v470 = vadd.f32 %v360, %v469
  %v471 = vpop.f32.mrf.mxu0
  %472 = vmatprep.mubr.bf16.mxu0 0
  %473 = vmatmul.mubr.bf16.gmra.mxu0 %v414
  %v474 = vpop.f32.mrf.mxu0
  %v475 = vadd.f32 %v365, %v474
  %v476 = vpop.f32.mrf.mxu0
  %v477 = vpop.f32.mrf.mxu0
  %v478 = vadd.f32 %v370, %v477
  %v479 = vpop.f32.mrf.mxu0
  %480 = vdwg.mxu0
  %v481 = vmax.f32 %v451, 0.0
  %v482 = vmax.f32 %v454, 0.0
  %v483 = vmax.f32 %v459, 0.0
  %v484 = vmax.f32 %v462, 0.0
  %v485 = vmax.f32 %v467, 0.0
  %v486 = vmax.f32 %v470, 0.0
  %v487 = vmax.f32 %v475, 0.0
  %v488 = vmax.f32 %v478, 0.0
  %v489 = vld [vmem:[%s8] sm:$0xf]
  %v490 = vld [vmem:[%s8 + $0x4] sm:$0xf]
  %v491 = vld [vmem:[%s8 + $0x8] sm:$0xf]
  %v492 = vld [vmem:[%s8 + $0xc] sm:$0xf]
  %v493 = vpack.c.bf16 %v482, %v481
  %v494 = vpack.c.bf16 %v484, %v483
  %v495 = vpack.c.bf16 %v486, %v485
  %v496 = vpack.c.bf16 %v488, %v487
  %v497 = vld [vmem:[%s9] sm:$0xff]
  %v498 = vld [vmem:[%s9 + $0x8] sm:$0xff]
  %v499 = vld [vmem:[%s9 + $0x10] sm:$0xff]
  %v500 = vld [vmem:[%s9 + $0x18] sm:$0xff]
  %502 = vset.pattern.permute.xlu0 0
  %503 = vperm.xlu0 %502, %v497
  %v504 = vpop.permute.xlu0 %503
  %507 = vset.pattern.permute.xlu0 0
  %508 = vperm.xlu0 %507, %v498
  %v509 = vpop.permute.xlu0 %508
  %512 = vset.pattern.permute.xlu0 0
  %513 = vperm.xlu0 %512, %v499
  %v514 = vpop.permute.xlu0 %513
  %517 = vset.pattern.permute.xlu0 0
  %518 = vperm.xlu0 %517, %v500
  %v519 = vpop.permute.xlu0 %518
  %v525 = vunpack.c.l.b16 %v489
  %v526 = vunpack.c.l.b16 %v490
  %v527 = vunpack.c.l.b16 %v491
  %v528 = vunpack.c.l.b16 %v492
  %v529 = vpack.c.b16 %v526, %v525
  %v530 = vpack.c.b16 %v528, %v527
  %v532 = vsel %vm256, %v529, 0
  %v535 = vsel %vm256, %v530, 0
  %537 = vmatprep.subr.bf16.mxu0 0
  %538 = vmatpush1.bf16.msra.mxu0 0
  %539 = vmatprep.subr.bf16.mxu0 0
  %540 = vmatpush1.bf16.msra.mxu0 0
  %541 = vmatprep.subr.bf16.mxu0 0
  %542 = vmatpush1.bf16.msra.mxu0 0
  %543 = vmatprep.subr.bf16.mxu0 0
  %544 = vmatpush1.bf16.msra.mxu0 0
  %545 = vmatprep.subr.bf16.mxu0 0
  %546 = vmatpush1.bf16.msra.mxu0 %v496
  %547 = vmatprep.subr.bf16.mxu0 0
  %548 = vmatpush1.bf16.msra.mxu0 %v495
  %549 = vmatprep.subr.bf16.mxu0 0
  %550 = vmatpush1.bf16.msra.mxu0 %v494
  %551 = vmatprep.subr.bf16.mxu0 0
  %552 = vmatpush1.bf16.msra.mxu0 %v493
  %553 = vmatprep.subr.bf16.mxu0 0
  %554 = vmatpush2.bf16.msra.mxu0 0
  %555 = vmatprep.subr.bf16.mxu0 0
  %556 = vmatpush2.bf16.msra.mxu0 0
  %557 = vmatprep.subr.bf16.mxu0 0
  %558 = vmatpush2.bf16.msra.mxu0 0
  %559 = vmatprep.subr.bf16.mxu0 0
  %560 = vmatpush2.bf16.msra.mxu0 0
  %561 = vmatprep.subr.bf16.mxu0 0
  %562 = vmatpush2.bf16.msra.mxu0 0
  %563 = vmatprep.subr.bf16.mxu0 0
  %564 = vmatpush2.bf16.msra.mxu0 0
  %565 = vmatprep.subr.bf16.mxu0 0
  %566 = vmatpush2.bf16.msra.mxu0 0
  %567 = vmatprep.subr.bf16.mxu0 0
  %568 = vmatpush2.bf16.msra.mxu0 0
  %569 = vmatprep.mubr.bf16.mxu0 0
  %570 = vmatmul.mubr.bf16.gmra.mxu0 %v532
  %v571 = vpop.f32.mrf.mxu0
  %v572 = vadd.f32 %v504, %v571
  %v573 = vpop.f32.mrf.mxu0
  %v574 = vpop.f32.mrf.mxu0
  %v575 = vadd.f32 %v509, %v574
  %v576 = vpop.f32.mrf.mxu0
  %577 = vmatprep.mubr.bf16.mxu0 0
  %578 = vmatmul.mubr.bf16.gmra.mxu0 %v535
  %v579 = vpop.f32.mrf.mxu0
  %v580 = vadd.f32 %v514, %v579
  %v581 = vpop.f32.mrf.mxu0
  %v582 = vpop.f32.mrf.mxu0
  %v583 = vadd.f32 %v519, %v582
  %v584 = vpop.f32.mrf.mxu0
  %585 = vdwg.mxu0
  %v586 = vmul.f32 %v298, %v572
  %v587 = vmul.f32 %v301, %v575
  %v588 = vmul.f32 %v306, %v580
  %v589 = vmul.f32 %v309, %v583
  %v591 = vsel %vm128, 1.0, 0
  %593 = vmatprep.subr.mxu0 0.0
  %594 = vmatpush1.msra.mxu0 0.0
  %595 = vmatprep.subr.mxu0 0.0
  %596 = vmatpush1.msra.mxu0 0.0
  %597 = vmatprep.subr.mxu0 0.0
  %598 = vmatpush1.msra.mxu0 0.0
  %599 = vmatprep.subr.mxu0 0.0
  %600 = vmatpush1.msra.mxu0 0.0
  %601 = vmatprep.subr.mxu0 0.0
  %602 = vmatpush1.msra.mxu0 0.0
  %603 = vmatprep.subr.mxu0 0.0
  %604 = vmatpush1.msra.mxu0 0.0
  %605 = vmatprep.subr.mxu0 0.0
  %606 = vmatpush1.msra.mxu0 0.0
  %607 = vmatprep.subr.mxu0 0.0
  %608 = vmatpush1.msra.mxu0 0.0
  %609 = vmatprep.subr.mxu0 0.0
  %610 = vmatpush1.msra.mxu0 0.0
  %611 = vmatprep.subr.mxu0 0.0
  %612 = vmatpush1.msra.mxu0 0.0
  %613 = vmatprep.subr.mxu0 0.0
  %614 = vmatpush1.msra.mxu0 0.0
  %615 = vmatprep.subr.mxu0 0.0
  %616 = vmatpush1.msra.mxu0 0.0
  %617 = vmatprep.subr.mxu0 0.0
  %618 = vmatpush1.msra.mxu0 %v589
  %619 = vmatprep.subr.mxu0 0.0
  %620 = vmatpush1.msra.mxu0 %v588
  %621 = vmatprep.subr.mxu0 0.0
  %622 = vmatpush1.msra.mxu0 %v587
  %623 = vmatprep.subr.mxu0 0.0
  %624 = vmatpush1.msra.mxu0 %v586
  %625 = vmatprep.subr.mxu0 0.0
  %626 = vmatpush2.msra.mxu0 0.0
  %627 = vmatprep.subr.mxu0 0.0
  %628 = vmatpush2.msra.mxu0 0.0
  %629 = vmatprep.subr.mxu0 0.0
  %630 = vmatpush2.msra.mxu0 0.0
  %631 = vmatprep.subr.mxu0 0.0
  %632 = vmatpush2.msra.mxu0 0.0
  %633 = vmatprep.subr.mxu0 0.0
  %634 = vmatpush2.msra.mxu0 0.0
  %635 = vmatprep.subr.mxu0 0.0
  %636 = vmatpush2.msra.mxu0 0.0
  %637 = vmatprep.subr.mxu0 0.0
  %638 = vmatpush2.msra.mxu0 0.0
  %639 = vmatprep.subr.mxu0 0.0
  %640 = vmatpush2.msra.mxu0 0.0
  %641 = vmatprep.subr.mxu0 0.0
  %642 = vmatpush2.msra.mxu0 0.0
  %643 = vmatprep.subr.mxu0 0.0
  %644 = vmatpush2.msra.mxu0 0.0
  %645 = vmatprep.subr.mxu0 0.0
  %646 = vmatpush2.msra.mxu0 0.0
  %647 = vmatprep.subr.mxu0 0.0
  %648 = vmatpush2.msra.mxu0 0.0
  %649 = vmatprep.subr.mxu0 0.0
  %650 = vmatpush2.msra.mxu0 0.0
  %651 = vmatprep.subr.mxu0 0.0
  %652 = vmatpush2.msra.mxu0 0.0
  %653 = vmatprep.subr.mxu0 0.0
  %654 = vmatpush2.msra.mxu0 0.0
  %655 = vmatprep.subr.mxu0 0.0
  %656 = vmatpush2.msra.mxu0 0.0
  %657 = vmatprep.mubr.f32.mxu0 0.0
  %658 = vmatmul.mubr.f32.gmra.mxu0 %v591
  %v659 = vpop.f32.mrf.mxu0
  %v660 = vadd.f32 0.0, %v659
  %v661 = vpop.f32.mrf.mxu0
  %662 = vdwg.mxu0
  %663 = vst [vmem:[%s10] sm:$0x1] %v660
  // Predicated region
  $region42: #{embed_recommender_forward.1} parent=0 // pred_check
    _
  $region43: #{embed_recommender_forward.1} parent=0 // pred_check_branch
    %665 = sbr.rel (0) target = $region45
  $region44: #{embed_recommender_forward.1} parent=0 // pred_region
    _
  $region45: #{embed_recommender_forward.1} parent=0 // pred_fallthru
    _
  // Predicated region
  $region46: #{embed_recommender_forward.1} parent=0 // pred_check
    _
  $region47: #{embed_recommender_forward.1} parent=0 // pred_check_branch
    %667 = sbr.rel (0) target = $region49
  $region48: #{embed_recommender_forward.1} parent=0 // pred_region
    _
  $region49: #{embed_recommender_forward.1} parent=0 // pred_fallthru
    _

</llo_original>
